<compile_context>
chip_gen: v7x
topology: tpu7x:2x2x1
jax: 0.10.0
libtpu: 0.0.40
codegen_flags: <defaults>
</compile_context>

<pallas_src>
import jax
import jax.numpy as jnp
from jax.experimental import pallas as pl
from jax.experimental.pallas import tpu as pltpu


# ---------------------------------------------------------------------------
# Tile-size selection (VMEM-budget driven, safe on v5e/v6e/v7x).
# ---------------------------------------------------------------------------
_VMEM_BUDGET_BYTES = 40 * 1024 * 1024   # sizing budget; fits v7x's 64 MiB physical
_VMEM_LIMIT_BYTES = 48 * 1024 * 1024    # raise scoped limit above 16/32 MiB defaults
_MAX_TB = 1024                          # diminishing returns past ~1024 rows


def _choose_batch_tile(B, H, n_streams, itemsize):
    """Largest batch tile (rows) that fits the VMEM budget, multiple of 8,
    dividing B; falls back to the full batch (always a legal block)."""
    # per-row bytes: n_streams double-buffered input windows
    #              + double-buffered output window + f32 accumulator margin.
    per_row = H * (2 * n_streams * itemsize + 2 * itemsize + 4)
    tb = max(8, _VMEM_BUDGET_BYTES // max(per_row, 1))
    tb = min(tb, _MAX_TB, B)
    tb = (tb // 8) * 8
    while tb >= 8 and B % tb != 0:
        tb -= 8
    if tb < 8:
        tb = B  # block == full array dim is always legal
    return tb


# ---------------------------------------------------------------------------
# Path A: few kwargs (N <= 4) -> N separate pipelined inputs, 1-D batch grid.
# ---------------------------------------------------------------------------
def _sum_kernel_multi(*refs):
    in_refs, out_ref = refs[:-1], refs[-1]
    acc = in_refs[0][...].astype(jnp.float32)
    for r in in_refs[1:]:
        acc = acc + r[...].astype(jnp.float32)
    out_ref[...] = acc.astype(out_ref.dtype)


def _pallas_sum_multi(values):
    B, H = values[0].shape
    dtype = values[0].dtype
    n = len(values)
    itemsize = jnp.dtype(dtype).itemsize
    tb = _choose_batch_tile(B, H, n, itemsize)
    spec = pl.BlockSpec((tb, H), lambda i: (i, 0))
    cost = pl.CostEstimate(
        flops=max(n - 1, 0) * B * H,
        transcendentals=0,
        bytes_accessed=(n + 1) * B * H * itemsize,
    )
    return pl.pallas_call(
        _sum_kernel_multi,
        out_shape=jax.ShapeDtypeStruct((B, H), dtype),
        grid=(B // tb,),
        in_specs=[spec] * n,
        out_specs=spec,
        compiler_params=pltpu.CompilerParams(
            dimension_semantics=("parallel",),
            vmem_limit_bytes=_VMEM_LIMIT_BYTES,
        ),
        cost_estimate=cost,
    )(*values)


# ---------------------------------------------------------------------------
# Path B: many kwargs (N > 4) -> one stacked [N, B, H] input, reduction axis
# last in the grid, f32 VMEM accumulator (init/accumulate/finalize via pl.when).
# ---------------------------------------------------------------------------
def _sum_kernel_stacked(x_ref, o_ref, acc_ref):
    k = pl.program_id(1)

    @pl.when(k == 0)
    def _():
        acc_ref[...] = jnp.zeros_like(acc_ref)

    acc_ref[...] += x_ref[...].astype(jnp.float32)

    @pl.when(k == pl.num_programs(1) - 1)
    def _():
        o_ref[...] = acc_ref[...].astype(o_ref.dtype)


def _pallas_sum_stacked(values):
    stacked = jnp.stack(values, axis=0)  # [N, B, H]
    n, B, H = stacked.shape
    dtype = stacked.dtype
    itemsize = jnp.dtype(dtype).itemsize
    # Single pipelined input stream regardless of N.
    tb = _choose_batch_tile(B, H, 1, itemsize)
    cost = pl.CostEstimate(
        flops=(n - 1) * B * H,
        transcendentals=0,
        bytes_accessed=(n + 1) * B * H * itemsize,
    )
    return pl.pallas_call(
        _sum_kernel_stacked,
        out_shape=jax.ShapeDtypeStruct((B, H), dtype),
        grid=(B // tb, n),  # batch (parallel) outer, reduction (arbitrary) last
        in_specs=[pl.BlockSpec((None, tb, H), lambda i, k: (k, i, 0))],
        out_specs=pl.BlockSpec((tb, H), lambda i, k: (i, 0)),
        scratch_shapes=[pltpu.VMEM((tb, H), jnp.float32)],
        compiler_params=pltpu.CompilerParams(
            dimension_semantics=("parallel", "arbitrary"),
            vmem_limit_bytes=_VMEM_LIMIT_BYTES,
        ),
        cost_estimate=cost,
    )(stacked)


# ---------------------------------------------------------------------------
# Inner "module": consumes a dict of tensors (deterministic key order).
# ---------------------------------------------------------------------------
class DictSumModule:
    def forward(self, inputs_dict):
        keys = sorted(inputs_dict.keys())
        values = [inputs_dict[k] for k in keys]
        if len(values) <= 4:
            return _pallas_sum_multi(values)
        return _pallas_sum_stacked(values)


# ---------------------------------------------------------------------------
# KwargsToDict: exact semantics of the PyTorch wrapper.
# ---------------------------------------------------------------------------
class KwargsToDict:
    """Module wrapper that packs keyword argument inputs into a dictionary."""

    def __init__(self, module):
        self.module = module

    def forward(self, **kwargs):
        return self.module.forward(kwargs)

    __call__ = forward


if __name__ == "__main__":
    key = jax.random.PRNGKey(0)
    B, H = 16, 128  # small, lane-aligned shapes

    wrapped = KwargsToDict(DictSumModule())

    # --- Case 1: few kwargs (multi-input pipelined path) ---------------------
    k1, k2, k3, key = *jax.random.split(key, 3), jax.random.split(key, 4)[-1]
    x = jax.random.normal(k1, (B, H), dtype=jnp.float32)
    y = jax.random.normal(k2, (B, H), dtype=jnp.float32)
    z = jax.random.normal(k3, (B, H), dtype=jnp.float32)

    out_a = jax.block_until_ready(wrapped(x=x, y=y, z=z))
    ref_a = x + y + z
    assert out_a.shape == (B, H)
    assert jnp.allclose(out_a, ref_a, atol=1e-5), "mismatch vs reference (multi path)"

    # --- Case 2: many kwargs (stacked-reduction path) ------------------------
    ks = jax.random.split(key, 6)
    many = {f"k{i}": jax.random.normal(ks[i], (B, H), dtype=jnp.float32)
            for i in range(6)}
    out_b = jax.block_until_ready(wrapped(**many))
    ref_b = sum(many[k] for k in sorted(many.keys()))
    assert out_b.shape == (B, H)
    assert jnp.allclose(out_b, ref_b, atol=1e-5), "mismatch vs reference (stacked path)"

    print("KERNEL_OK")
</pallas_src>

<mosaic_0001>
module attributes {stable_mosaic.version = 11 : i64} {
  func.func @_sum_kernel_multi(%arg0: i32, %arg1: memref<16x128xf32, #tpu.memory_space<vmem>>, %arg2: memref<16x128xf32, #tpu.memory_space<vmem>>, %arg3: memref<16x128xf32, #tpu.memory_space<vmem>>, %arg4: memref<16x128xf32, #tpu.memory_space<vmem>>) attributes {dimension_semantics = [#tpu.dimension_semantics<parallel>], iteration_bounds = array<i64: 1>, scalar_prefetch = 0 : i64, scratch_operands = 0 : i64, tpu.core_type = #tpu.core_type<tc>, window_params = [{transform_indices = @transform_0, window_bounds = array<i64: 16, 128>}, {transform_indices = @transform_1, window_bounds = array<i64: 16, 128>}, {transform_indices = @transform_2, window_bounds = array<i64: 16, 128>}, {transform_indices = @transform_3, window_bounds = array<i64: 16, 128>}]} {
    %c0 = arith.constant 0 : index
    %c0_0 = arith.constant 0 : index
    %0 = vector.load %arg1[%c0, %c0_0] : memref<16x128xf32, #tpu.memory_space<vmem>>, vector<16x128xf32>
    %c0_1 = arith.constant 0 : index
    %c0_2 = arith.constant 0 : index
    %1 = vector.load %arg2[%c0_1, %c0_2] : memref<16x128xf32, #tpu.memory_space<vmem>>, vector<16x128xf32>
    %2 = arith.addf %0, %1 : vector<16x128xf32>
    %c0_3 = arith.constant 0 : index
    %c0_4 = arith.constant 0 : index
    %3 = vector.load %arg3[%c0_3, %c0_4] : memref<16x128xf32, #tpu.memory_space<vmem>>, vector<16x128xf32>
    %4 = arith.addf %2, %3 : vector<16x128xf32>
    %c0_5 = arith.constant 0 : index
    %c0_6 = arith.constant 0 : index
    %5 = vector.load %arg4[%c0_5, %c0_6] : memref<16x128xf32, #tpu.memory_space<vmem>>, vector<16x128xf32>
    tpu.vector_store %arg4[%c0_5, %c0_6], %4 {strides = array<i32>} : memref<16x128xf32, #tpu.memory_space<vmem>>, vector<16x128xf32>,
    return
  }
  func.func @transform_0(%arg0: i32) -> (i32, i32) {
    %c0_i32 = arith.constant 0 : i32
    %c0_i32_0 = arith.constant 0 : i32
    return %arg0, %c0_i32 : i32, i32
  }
  func.func @transform_1(%arg0: i32) -> (i32, i32) {
    %c0_i32 = arith.constant 0 : i32
    %c0_i32_0 = arith.constant 0 : i32
    return %arg0, %c0_i32 : i32, i32
  }
  func.func @transform_2(%arg0: i32) -> (i32, i32) {
    %c0_i32 = arith.constant 0 : i32
    %c0_i32_0 = arith.constant 0 : i32
    return %arg0, %c0_i32 : i32, i32
  }
  func.func @transform_3(%arg0: i32) -> (i32, i32) {
    %c0_i32 = arith.constant 0 : i32
    %c0_i32_0 = arith.constant 0 : i32
    return %arg0, %c0_i32 : i32, i32
  }
}

</mosaic_0001>

<llo_original>
// kernel: tpu_custom_call.1
$region0: #{tpu_custom_call.1}
  #allocation0 [shape = 'u32[]', space=smem, size = 0x4, offset = 0x4, fixed_abs, tag = 'smem constant byte address 0x4 - core index']
  #allocation1 [shape = 'u32[144,128]{1,0:T(1,128)}', space=vmem, size = 0x12000, scoped, tag = 'internal scratch']
  %s0 = inlined_call_operand.hbm [shape: f32[16,128], index: 0, kind: input, shape index: {}]
  %s1 = inlined_call_operand.hbm [shape: f32[16,128], index: 1, kind: input, shape index: {}]
  %s2 = inlined_call_operand.hbm [shape: f32[16,128], index: 2, kind: input, shape index: {}]
  %s3 = inlined_call_operand.hbm [shape: f32[16,128], index: 3, kind: output, shape index: {}]
  %s4 = sld [smem:[#allocation0]]
  $region34: #{tpu_custom_call.1} parent=0
    _
  %s6 = ssub.s32 1, %s4
  %s7 = scalar_select 0, %s6, %s4
  $region1: #{tpu_custom_call.1} parent=0
    #allocation2 [shape = 'u8[8192]{0}', space=vmem, size = 0x2000, scoped, tag = 'input window, operand 0, single buffered']
    #allocation3 [shape = 's32[1]{0}', space=sflag, size = 0x4, scoped, tag = 'scoped memory for tpu_custom_call.1']
    #allocation4 [shape = 's32[1]{0}', space=sflag, size = 0x4, scoped, tag = 'scoped memory for tpu_custom_call.1']
    #allocation5 [shape = 'u8[8192]{0}', space=vmem, size = 0x2000, scoped, tag = 'input window, operand 1, single buffered']
    #allocation6 [shape = 's32[1]{0}', space=sflag, size = 0x4, scoped, tag = 'scoped memory for tpu_custom_call.1']
    #allocation7 [shape = 'u8[8192]{0}', space=vmem, size = 0x2000, scoped, tag = 'input window, operand 2, single buffered']
    #allocation8 [shape = 'u8[8192]{0}', space=vmem, size = 0x2000, scoped, tag = 'output window, operand 0, single buffered']
    %8 = vsyncpa [#allocation3], 0
    %9 = vsyncpa [#allocation6], 0
    %10 = vsyncpa [#allocation4], 0
    // Predicated region
    $region2: #{tpu_custom_call.1} parent=1 // pred_check
      _
    $region3: #{tpu_custom_call.1} parent=1 // pred_check_branch
      %12 = sbr.rel (0) target = $region5
    $region4: #{tpu_custom_call.1} parent=1 // pred_region
      %s14 = ssub.s32 256, 256
      %15 = vsyncadd [#allocation3], %s14
      %s16 = sshll.u32 [#allocation2], 4
      %s17 = int_to_ptr.vmem [resolvable:$true] %s16
      %22 = dma.hbm_to_vmem [thread:$0]  %s0, 256, %s17, [#allocation3], 128, 128, 8
    $region5: #{tpu_custom_call.1} parent=1 // pred_fallthru
      _
    // Predicated region
    $region6: #{tpu_custom_call.1} parent=1 // pred_check
      _
    $region7: #{tpu_custom_call.1} parent=1 // pred_check_branch
      %24 = sbr.rel (0) target = $region9
    $region8: #{tpu_custom_call.1} parent=1 // pred_region
      %s26 = ssub.s32 256, 256
      %27 = vsyncadd [#allocation6], %s26
      %s28 = sshll.u32 [#allocation5], 4
      %s29 = int_to_ptr.vmem [resolvable:$true] %s28
      %34 = dma.hbm_to_vmem [thread:$0]  %s1, 256, %s29, [#allocation6], 128, 128, 8
    $region9: #{tpu_custom_call.1} parent=1 // pred_fallthru
      _
    // Predicated region
    $region10: #{tpu_custom_call.1} parent=1 // pred_check
      _
    $region11: #{tpu_custom_call.1} parent=1 // pred_check_branch
      %36 = sbr.rel (0) target = $region13
    $region12: #{tpu_custom_call.1} parent=1 // pred_region
      %s38 = ssub.s32 256, 256
      %39 = vsyncadd [#allocation6], %s38
      %s40 = sshll.u32 [#allocation7], 4
      %s41 = int_to_ptr.vmem [resolvable:$true] %s40
      %46 = dma.hbm_to_vmem [thread:$0]  %s2, 256, %s41, [#allocation6], 128, 128, 8
    $region13: #{tpu_custom_call.1} parent=1 // pred_fallthru
      _
    // Predicated region
    $region14: #{tpu_custom_call.1} parent=1 // pred_check
      _
    $region15: #{tpu_custom_call.1} parent=1 // pred_check_branch
      %48 = sbr.rel (0) target = $region17
    $region16: #{tpu_custom_call.1} parent=1 // pred_region
      %49 = dma.done [#allocation3], 256
    $region17: #{tpu_custom_call.1} parent=1 // pred_fallthru
      _
    // Predicated region
    $region18: #{tpu_custom_call.1} parent=1 // pred_check
      _
    $region19: #{tpu_custom_call.1} parent=1 // pred_check_branch
      %51 = sbr.rel (0) target = $region21
    $region20: #{tpu_custom_call.1} parent=1 // pred_region
      %52 = dma.done [#allocation6], 256
    $region21: #{tpu_custom_call.1} parent=1 // pred_fallthru
      _
    // Predicated region
    $region22: #{tpu_custom_call.1} parent=1 // pred_check
      _
    $region23: #{tpu_custom_call.1} parent=1 // pred_check_branch
      %54 = sbr.rel (0) target = $region25
    $region24: #{tpu_custom_call.1} parent=1 // pred_region
      %55 = dma.done [#allocation6], 256
    $region25: #{tpu_custom_call.1} parent=1 // pred_fallthru
      _
    %v56 = vld [vmem:[#allocation2] sm:$0xff]
    %v57 = vld [vmem:[#allocation2 + $0x8] sm:$0xff]
    %v58 = vld [vmem:[#allocation5] sm:$0xff]
    %v59 = vld [vmem:[#allocation5 + $0x8] sm:$0xff]
    %v60 = vadd.f32 %v56, %v58
    %v61 = vadd.f32 %v57, %v59
    %v62 = vld [vmem:[#allocation7] sm:$0xff]
    %v63 = vld [vmem:[#allocation7 + $0x8] sm:$0xff]
    %v64 = vadd.f32 %v60, %v62
    %v65 = vadd.f32 %v61, %v63
    %66 = vst [vmem:[#allocation8] sm:$0xff] %v64
    %67 = vst [vmem:[#allocation8 + $0x8] sm:$0xff] %v65
    // Predicated region
    $region26: #{tpu_custom_call.1} parent=1 // pred_check
      _
    $region27: #{tpu_custom_call.1} parent=1 // pred_check_branch
      %69 = sbr.rel (0) target = $region29
    $region28: #{tpu_custom_call.1} parent=1 // pred_region
      %s71 = ssub.s32 256, 256
      %72 = vsyncadd [#allocation4], %s71
      %s73 = sshll.u32 [#allocation8], 4
      %s74 = int_to_ptr.vmem [resolvable:$true] %s73
      %79 = dma.vmem_to_hbm [thread:$0]  %s74, 256, %s3, [#allocation4], 128, 128, 8
    $region29: #{tpu_custom_call.1} parent=1 // pred_fallthru
      _
    // Predicated region
    $region30: #{tpu_custom_call.1} parent=1 // pred_check
      _
    $region31: #{tpu_custom_call.1} parent=1 // pred_check_branch
      %81 = sbr.rel (0) target = $region33
    $region32: #{tpu_custom_call.1} parent=1 // pred_region
      %82 = dma.done [#allocation4], 256
    $region33: #{tpu_custom_call.1} parent=1 // pred_fallthru
      _
    %83 = vsyncpa [#allocation3], 1
    %84 = vsyncpa [#allocation6], 1
    %85 = vsyncpa [#allocation4], 1

</llo_original>
